<compile_context>
chip_gen: v7x
topology: tpu7x:2x2x1
jax: 0.10.0
libtpu: 0.0.40
codegen_flags: <defaults>
</compile_context>

<pallas_src>
import functools
import math

import jax
import jax.numpy as jnp
from jax.experimental import pallas as pl
from jax.experimental.pallas import tpu as pltpu


# ----------------------------------------------------------------------------
# constants / helpers
# ----------------------------------------------------------------------------
_BLOCK_ELEMS = 1 << 20        # ~4 MiB per f32 block (measured 2-4 MiB sweet spot)
_MIN_PALLAS_ELEMS = 4096      # below this, fused XLA elementwise is cheaper.
                              # (Kept deliberately low so the small demo shapes
                              #  below still exercise the Pallas path.)
_GAMMA, _ZETA = -0.1, 1.1


def _round_up(a: int, b: int) -> int:
    return (a + b - 1) // b * b


def _vmem_limit(block_bytes: int, n_big: int) -> int:
    # double-buffered big blocks + headroom, capped at 32 MiB (v7x-safe).
    return int(max(8 << 20, min(32 << 20, 2 * n_big * block_bytes + (2 << 20))))


# ----------------------------------------------------------------------------
# pure-JAX fallback (also serves as the reference in the test harness)
# ----------------------------------------------------------------------------
def _jnp_fq_per_tensor(x, scale, zero_point, alpha, qmin, qmax, use_ada):
    s = jnp.asarray(scale, dtype=jnp.float32).reshape(-1)[0]
    zp = jnp.asarray(zero_point, dtype=jnp.float32).reshape(-1)[0]
    xf = x.astype(jnp.float32)
    if use_ada:
        h = jnp.clip((_ZETA - _GAMMA) * jax.nn.sigmoid(alpha.astype(jnp.float32))
                     + _GAMMA, 0.0, 1.0)
        xq = jnp.clip(jnp.floor(xf / s) + h + zp, qmin, qmax)
    else:
        xq = jnp.clip(jnp.round(xf / s) + zp, qmin, qmax)
    return ((xq - zp) * s).astype(x.dtype)


def _jnp_fq_per_channel(x, scale, zero_point, alpha, ch_axis, qmin, qmax, use_ada):
    new_shape = [1] * x.ndim
    new_shape[ch_axis] = x.shape[ch_axis]
    s = jnp.asarray(scale, dtype=jnp.float32).reshape(new_shape)
    zp = jnp.asarray(zero_point, dtype=jnp.float32).reshape(new_shape)
    xf = x.astype(jnp.float32)
    if use_ada:
        h = jnp.clip((_ZETA - _GAMMA) * jax.nn.sigmoid(alpha.astype(jnp.float32))
                     + _GAMMA, 0.0, 1.0)
        xq = jnp.clip(jnp.floor(xf / s) + h + zp, qmin, qmax)
    else:
        xq = jnp.clip(jnp.round(xf / s) + zp, qmin, qmax)
    return ((xq - zp) * s).astype(x.dtype)


# ----------------------------------------------------------------------------
# per-tensor Pallas path (ch_axis == -1)
# ----------------------------------------------------------------------------
def _per_tensor_pallas(x, params, alpha, qmin, qmax, use_ada, lane_w):
    orig_shape = x.shape
    size = x.size
    rows = size // lane_w
    x2 = x.reshape(rows, lane_w)                       # free contiguous reshape

    # sublane tile: whole thing if it fits in one ~4 MiB block, else mult-of-8.
    if rows <= _BLOCK_ELEMS // lane_w:
        tm = rows
    else:
        tm = max(8, (_BLOCK_ELEMS // lane_w) // 8 * 8)
    # guarantee >= 2 grid steps when possible (v7x dual TensorCores).
    if pl.cdiv(rows, tm) < 2 and rows >= 16:
        tm = max(8, _round_up(pl.cdiv(rows, 2), 8))
    grid = (pl.cdiv(rows, tm),)

    def rtn_kernel(p_ref, x_ref, o_ref):
        inv_s = p_ref[0]
        s = p_ref[1]
        zp = p_ref[2]
        xv = x_ref[...].astype(jnp.float32)
        xq = jnp.clip(jnp.round(xv * inv_s) + zp, qmin, qmax)
        o_ref[...] = ((xq - zp) * s).astype(o_ref.dtype)

    def ada_kernel(p_ref, x_ref, a_ref, o_ref):
        inv_s = p_ref[0]
        s = p_ref[1]
        zp = p_ref[2]
        xv = x_ref[...].astype(jnp.float32)
        av = a_ref[...].astype(jnp.float32)
        h = jnp.clip((_ZETA - _GAMMA) * jax.nn.sigmoid(av) + _GAMMA, 0.0, 1.0)
        xq = jnp.clip(jnp.floor(xv * inv_s) + h + zp, qmin, qmax)
        o_ref[...] = ((xq - zp) * s).astype(o_ref.dtype)

    smem_spec = pl.BlockSpec(memory_space=pltpu.MemorySpace.SMEM)
    blk = pl.BlockSpec((tm, lane_w), lambda i: (i, 0))

    if use_ada:
        kern = ada_kernel
        ins = (params, x2, alpha.reshape(rows, lane_w))
        in_specs = [smem_spec, blk, blk]
        n_big = 3                                       # x, alpha, out
    else:
        kern = rtn_kernel
        ins = (params, x2)
        in_specs = [smem_spec, blk]
        n_big = 2                                       # x, out

    block_bytes = tm * lane_w * x.dtype.itemsize
    out2 = pl.pallas_call(
        kern,
        out_shape=jax.ShapeDtypeStruct((rows, lane_w), x.dtype),
        grid_spec=pltpu.PrefetchScalarGridSpec(
            num_scalar_prefetch=0,
            grid=grid,
            in_specs=in_specs,
            out_specs=blk),
        compiler_params=pltpu.CompilerParams(
            dimension_semantics=("parallel",),
            vmem_limit_bytes=_vmem_limit(block_bytes, n_big)),
    )(*ins)
    return out2.reshape(orig_shape)


@functools.partial(jax.jit, static_argnames=("qmin", "qmax", "use_ada"))
def _fq_per_tensor(x, scale, zero_point, alpha, *, qmin, qmax, use_ada):
    size = x.size
    lane_w = next((lw for lw in (1024, 512, 256, 128) if size % lw == 0), None)
    if size < _MIN_PALLAS_ELEMS or lane_w is None:
        # TODO(synk): ragged (size % 128 != 0) tails use the fused-XLA path
        #             instead of a masked in-kernel store on the last block.
        return _jnp_fq_per_tensor(x, scale, zero_point, alpha, qmin, qmax, use_ada)
    s = jnp.asarray(scale, dtype=jnp.float32).reshape(-1)[0]
    zp = jnp.asarray(zero_point, dtype=jnp.float32).reshape(-1)[0]
    params = jnp.stack([1.0 / s, s, zp])                # SMEM scalars, no recompile
    return _per_tensor_pallas(x, params, alpha, qmin, qmax, use_ada, lane_w)


# ----------------------------------------------------------------------------
# per-channel Pallas path (ch_axis != -1) — no transposes, any ch_axis
# ----------------------------------------------------------------------------
def _per_channel_pallas(x, s_col, z_col, alpha, pre, C, post, qmin, qmax, use_ada):
    orig_shape = x.shape
    x3 = x.reshape(pre, C, post)                        # free contiguous reshape

    # last dim: full extent (always legal) or a 128-multiple tile.
    tpost = min(post, 1024)
    # channel dim: full extent or a multiple of 8.
    tc = C if C * tpost <= _BLOCK_ELEMS else max(8, (_BLOCK_ELEMS // tpost) // 8 * 8)
    bp = max(1, min(pre, _BLOCK_ELEMS // (tc * tpost)))
    # guarantee >= 2 grid steps when possible (v7x dual TensorCores).
    if pl.cdiv(pre, bp) * pl.cdiv(C, tc) * pl.cdiv(post, tpost) < 2:
        if post >= 256:
            tpost = max(128, _round_up(pl.cdiv(post, 2), 128))
        elif C >= 16:
            tc = max(8, _round_up(pl.cdiv(C, 2), 8))
        elif pre >= 2:
            bp = pl.cdiv(pre, 2)
    grid = (pl.cdiv(pre, bp), pl.cdiv(C, tc), pl.cdiv(post, tpost))

    def rtn_kernel(x_ref, s_ref, z_ref, o_ref):
        xv = x_ref[...].astype(jnp.float32)             # (bp, tc, tpost)
        s = s_ref[...][None]                            # (1, tc, 1) lane-broadcast
        zp = z_ref[...][None]
        inv_s = 1.0 / s                                 # tiny column reciprocal
        xq = jnp.clip(jnp.round(xv * inv_s) + zp, qmin, qmax)
        o_ref[...] = ((xq - zp) * s).astype(o_ref.dtype)

    def ada_kernel(x_ref, a_ref, s_ref, z_ref, o_ref):
        xv = x_ref[...].astype(jnp.float32)
        av = a_ref[...].astype(jnp.float32)
        s = s_ref[...][None]
        zp = z_ref[...][None]
        inv_s = 1.0 / s
        h = jnp.clip((_ZETA - _GAMMA) * jax.nn.sigmoid(av) + _GAMMA, 0.0, 1.0)
        xq = jnp.clip(jnp.floor(xv * inv_s) + h + zp, qmin, qmax)
        o_ref[...] = ((xq - zp) * s).astype(o_ref.dtype)

    xblk = pl.BlockSpec((bp, tc, tpost), lambda i, j, k: (i, j, k))
    sblk = pl.BlockSpec((tc, 1), lambda i, j, k: (j, 0))

    if use_ada:
        kern = ada_kernel
        ins = (x3, alpha.reshape(pre, C, post), s_col, z_col)
        in_specs = [xblk, xblk, sblk, sblk]
        n_big = 3                                       # x, alpha, out
    else:
        kern = rtn_kernel
        ins = (x3, s_col, z_col)
        in_specs = [xblk, sblk, sblk]
        n_big = 2                                       # x, out

    block_bytes = bp * tc * tpost * x.dtype.itemsize
    out3 = pl.pallas_call(
        kern,
        out_shape=jax.ShapeDtypeStruct((pre, C, post), x.dtype),
        grid_spec=pltpu.PrefetchScalarGridSpec(
            num_scalar_prefetch=0,
            grid=grid,
            in_specs=in_specs,
            out_specs=xblk),
        compiler_params=pltpu.CompilerParams(
            dimension_semantics=("parallel", "parallel", "parallel"),
            vmem_limit_bytes=_vmem_limit(block_bytes, n_big)),
    )(*ins)
    return out3.reshape(orig_shape)


@functools.partial(jax.jit, static_argnames=("ch_axis", "qmin", "qmax", "use_ada"))
def _fq_per_channel(x, scale, zero_point, alpha, *, ch_axis, qmin, qmax, use_ada):
    if x.size < _MIN_PALLAS_ELEMS:
        return _jnp_fq_per_channel(x, scale, zero_point, alpha, ch_axis,
                                   qmin, qmax, use_ada)
    C = x.shape[ch_axis]
    pre = math.prod(x.shape[:ch_axis])
    post = math.prod(x.shape[ch_axis + 1:])
    s_col = jnp.asarray(scale, dtype=jnp.float32).reshape(C, 1)
    z_col = jnp.asarray(zero_point, dtype=jnp.float32).reshape(C, 1)
    return _per_channel_pallas(x, s_col, z_col, alpha, pre, C, post,
                               qmin, qmax, use_ada)


# ----------------------------------------------------------------------------
# module wrapper mirroring AdaRoundFakeQuantize.forward
# ----------------------------------------------------------------------------
class AdaRoundFakeQuantizePallas:
    def __init__(self, bit=8, symmetric=False, ch_axis=-1):
        self.bit = bit
        self.symmetric = symmetric
        self.ch_axis = ch_axis
        if symmetric:
            self.quant_min = -2 ** (bit - 1)
            self.quant_max = 2 ** (bit - 1) - 1
        else:
            self.quant_min = 0
            self.quant_max = 2 ** bit - 1
        self.scale = jnp.array([1.0], dtype=jnp.float32)
        self.zero_point = jnp.array([0], dtype=jnp.int32)
        self.observer_enabled = 0
        self.fake_quant_enabled = 0
        self.adaround = False
        self.gamma, self.zeta = _GAMMA, _ZETA
        self.round_mode = None
        self.alpha = None

    def enable_fake_quant(self): self.fake_quant_enabled = 1
    def disable_fake_quant(self): self.fake_quant_enabled = 0
    def enable_observer(self): self.observer_enabled = 1
    def disable_observer(self): self.observer_enabled = 0

    def init(self, weight_tensor, round_mode):
        self.adaround = True
        self.round_mode = round_mode
        self.init_alpha(weight_tensor)

    def init_alpha(self, x):
        if self.ch_axis != -1:
            new_shape = [1] * x.ndim
            new_shape[self.ch_axis] = x.shape[self.ch_axis]
            scale = self.scale.reshape(new_shape)
        else:
            scale = self.scale
        x_floor = jnp.floor(x / scale)
        if self.round_mode == "learned_hard_sigmoid":
            rest = x / scale - x_floor
            self.alpha = -jnp.log((self.zeta - self.gamma) / (rest - self.gamma) - 1.0)
        else:
            raise NotImplementedError

    def forward(self, X):
        if self.observer_enabled == 1:
            # TODO(synk): observer min/max tracking + qparam update is
            #             host-side stateful buffer mutation; not a kernel.
            pass
        if self.fake_quant_enabled == 1:
            if self.adaround:
                if self.round_mode != "learned_hard_sigmoid" or self.alpha is None:
                    raise NotImplementedError
            alpha = self.alpha if self.adaround else None
            if self.ch_axis != -1:
                X = _fq_per_channel(X, self.scale, self.zero_point, alpha,
                                    ch_axis=self.ch_axis % X.ndim,
                                    qmin=self.quant_min, qmax=self.quant_max,
                                    use_ada=self.adaround)
            else:
                X = _fq_per_tensor(X, self.scale, self.zero_point, alpha,
                                   qmin=self.quant_min, qmax=self.quant_max,
                                   use_ada=self.adaround)
        return X

    __call__ = forward


# ----------------------------------------------------------------------------
# test harness
# ----------------------------------------------------------------------------
def _assert_close_quant(out, ref, max_scale):
    # Strict everywhere except vanishingly-rare boundary flips (reciprocal-
    # multiply vs divide), which move a value by exactly one quantization step.
    out = jnp.asarray(out); ref = jnp.asarray(ref)
    assert out.shape == ref.shape and out.dtype == ref.dtype
    err = jnp.abs(out - ref)
    max_err = float(jnp.max(err))
    n_bad = int(jnp.sum(err > 1e-5))
    assert max_err <= float(max_scale) * 1.001 + 1e-6, max_err
    assert n_bad <= max(1, out.size // 200), n_bad


if __name__ == "__main__":
    key = jax.random.PRNGKey(0)
    kx, kw, ks, ka, kb = jax.random.split(key, 5)

    # ---- per-tensor (ch_axis = -1), Pallas path ------------------------------
    x = jax.random.normal(kx, (2, 8, 32, 32), dtype=jnp.float32)     # 16384 elems
    fq = AdaRoundFakeQuantizePallas(bit=8, symmetric=False, ch_axis=-1)
    fq.enable_fake_quant()
    fq.scale = jnp.array([0.03], dtype=jnp.float32)
    fq.zero_point = jnp.array([128], dtype=jnp.int32)

    out = jax.block_until_ready(fq(x))
    ref = _jnp_fq_per_tensor(x, fq.scale, fq.zero_point, None,
                             fq.quant_min, fq.quant_max, False)
    _assert_close_quant(out, ref, 0.03)

    # changing scale must reuse the same compiled kernel (scale is traced, not baked)
    fq.scale = jnp.array([0.02], dtype=jnp.float32)
    out = jax.block_until_ready(fq(x))
    ref = _jnp_fq_per_tensor(x, fq.scale, fq.zero_point, None,
                             fq.quant_min, fq.quant_max, False)
    _assert_close_quant(out, ref, 0.02)

    # AdaRound ('learned_hard_sigmoid')
    fq.init(x, "learned_hard_sigmoid")
    out = jax.block_until_ready(fq(x))
    ref = _jnp_fq_per_tensor(x, fq.scale, fq.zero_point, fq.alpha,
                             fq.quant_min, fq.quant_max, True)
    _assert_close_quant(out, ref, 0.02)

    # ---- small per-tensor input exercises the fused-XLA fallback -------------
    xs = jax.random.normal(kb, (2, 4, 16, 16), dtype=jnp.float32)    # 2048 elems
    fqs = AdaRoundFakeQuantizePallas(bit=8, symmetric=False, ch_axis=-1)
    fqs.enable_fake_quant()
    fqs.scale = jnp.array([0.05], dtype=jnp.float32)
    fqs.zero_point = jnp.array([128], dtype=jnp.int32)
    out = jax.block_until_ready(fqs(xs))
    ref = _jnp_fq_per_tensor(xs, fqs.scale, fqs.zero_point, None,
                             fqs.quant_min, fqs.quant_max, False)
    _assert_close_quant(out, ref, 0.05)

    # ---- per-channel (ch_axis = 0), weight-like tensor ------------------------
    w = jax.random.normal(kw, (32, 16, 3, 3), dtype=jnp.float32) * 0.1
    fqc = AdaRoundFakeQuantizePallas(bit=8, symmetric=False, ch_axis=0)
    fqc.enable_fake_quant()
    n_ch = w.shape[0]
    fqc.scale = jnp.abs(jax.random.normal(ks, (n_ch,), jnp.float32)) * 0.002 + 0.001
    fqc.zero_point = jnp.full((n_ch,), 128, dtype=jnp.int32)

    out = jax.block_until_ready(fqc(w))
    ref = _jnp_fq_per_channel(w, fqc.scale, fqc.zero_point, None, 0,
                              fqc.quant_min, fqc.quant_max, False)
    _assert_close_quant(out, ref, float(jnp.max(fqc.scale)))

    fqc.init(w, "learned_hard_sigmoid")
    out = jax.block_until_ready(fqc(w))
    ref = _jnp_fq_per_channel(w, fqc.scale, fqc.zero_point, fqc.alpha, 0,
                              fqc.quant_min, fqc.quant_max, True)
    _assert_close_quant(out, ref, float(jnp.max(fqc.scale)))

    # ---- per-channel (ch_axis = 1), activation-like, no transpose needed -----
    a = jax.random.normal(ka, (2, 32, 16, 16), dtype=jnp.float32)
    fqa = AdaRoundFakeQuantizePallas(bit=8, symmetric=False, ch_axis=1)
    fqa.enable_fake_quant()
    fqa.scale = jnp.abs(jax.random.normal(ks, (32,), jnp.float32)) * 0.01 + 0.005
    fqa.zero_point = jnp.full((32,), 128, dtype=jnp.int32)
    out = jax.block_until_ready(fqa(a))
    ref = _jnp_fq_per_channel(a, fqa.scale, fqa.zero_point, None, 1,
                              fqa.quant_min, fqa.quant_max, False)
    _assert_close_quant(out, ref, float(jnp.max(fqa.scale)))

    print("KERNEL_OK")
</pallas_src>

<mosaic_0001>
module attributes {stable_mosaic.version = 11 : i64} {
  func.func @rtn_kernel(%arg0: i32, %arg1: memref<3xf32, #tpu.memory_space<smem>>, %arg2: memref<8x1024xf32, #tpu.memory_space<vmem>>, %arg3: memref<8x1024xf32, #tpu.memory_space<vmem>>) attributes {dimension_semantics = [#tpu.dimension_semantics<parallel>], iteration_bounds = array<i64: 2>, scalar_prefetch = 0 : i64, scratch_operands = 0 : i64, tpu.core_type = #tpu.core_type<tc>, window_params = [{transform_indices = @transform_0, window_bounds = array<i64: 3>}, {transform_indices = @transform_1, window_bounds = array<i64: 8, 1024>}, {transform_indices = @transform_2, window_bounds = array<i64: 8, 1024>}]} {
    %c0 = arith.constant 0 : index
    %0 = memref.load %arg1[%c0] : memref<3xf32, #tpu.memory_space<smem>>
    %c1 = arith.constant 1 : index
    %1 = memref.load %arg1[%c1] : memref<3xf32, #tpu.memory_space<smem>>
    %c2 = arith.constant 2 : index
    %2 = memref.load %arg1[%c2] : memref<3xf32, #tpu.memory_space<smem>>
    %c0_0 = arith.constant 0 : index
    %c0_1 = arith.constant 0 : index
    %3 = vector.load %arg2[%c0_0, %c0_1] : memref<8x1024xf32, #tpu.memory_space<vmem>>, vector<8x1024xf32>
    %4 = vector.broadcast %0 : f32 to vector<8x1024xf32>
    %5 = arith.mulf %3, %4 : vector<8x1024xf32>
    %6 = math.roundeven %5 : vector<8x1024xf32>
    %7 = vector.broadcast %2 : f32 to vector<8x1024xf32>
    %8 = arith.addf %6, %7 : vector<8x1024xf32>
    %c0_i32 = arith.constant 0 : i32
    %c255_i32 = arith.constant 255 : i32
    %9 = arith.sitofp %c0_i32 : i32 to f32
    %10 = vector.broadcast %9 : f32 to vector<8x1024xf32>
    %11 = arith.maximumf %10, %8 : vector<8x1024xf32>
    %12 = arith.sitofp %c255_i32 : i32 to f32
    %13 = vector.broadcast %12 : f32 to vector<8x1024xf32>
    %14 = arith.minimumf %13, %11 : vector<8x1024xf32>
    %15 = vector.broadcast %2 : f32 to vector<8x1024xf32>
    %16 = arith.subf %14, %15 : vector<8x1024xf32>
    %17 = vector.broadcast %1 : f32 to vector<8x1024xf32>
    %18 = arith.mulf %16, %17 : vector<8x1024xf32>
    %c0_2 = arith.constant 0 : index
    %c0_3 = arith.constant 0 : index
    %19 = vector.load %arg3[%c0_2, %c0_3] : memref<8x1024xf32, #tpu.memory_space<vmem>>, vector<8x1024xf32>
    tpu.vector_store %arg3[%c0_2, %c0_3], %18 {strides = array<i32>} : memref<8x1024xf32, #tpu.memory_space<vmem>>, vector<8x1024xf32>,
    return
  }
  func.func @transform_0(%arg0: i32) -> i32 {
    %c0_i32 = arith.constant 0 : i32
    %c0_i32_0 = arith.constant 0 : i32
    return %c0_i32 : i32
  }
  func.func @transform_1(%arg0: i32) -> (i32, i32) {
    %c0_i32 = arith.constant 0 : i32
    %c0_i32_0 = arith.constant 0 : i32
    return %arg0, %c0_i32 : i32, i32
  }
  func.func @transform_2(%arg0: i32) -> (i32, i32) {
    %c0_i32 = arith.constant 0 : i32
    %c0_i32_0 = arith.constant 0 : i32
    return %arg0, %c0_i32 : i32, i32
  }
}

</mosaic_0001>

<llo_original>
// kernel: _fq_per_tensor.1
$region0: #{_fq_per_tensor.1}
  #allocation0 [shape = 'u32[]', space=smem, size = 0x4, offset = 0x4, fixed_abs, tag = 'smem constant byte address 0x4 - core index']
  #allocation1 [shape = 'u32[144,128]{1,0:T(1,128)}', space=vmem, size = 0x12000, scoped, tag = 'internal scratch']
  %s0 = inlined_call_operand.vmem [shape: f32[3], index: 0, kind: input, shape index: {}]
  %s1 = inlined_call_operand.vmem [shape: f32[16,1024], index: 1, kind: input, shape index: {}]
  %s2 = inlined_call_operand.vmem [shape: f32[16,1024], index: 2, kind: output, shape index: {}]
  %s3 = sld [smem:[#allocation0]]
  $region45: #{_fq_per_tensor.1} parent=0
    _
  %s5 = ssub.s32 1, %s3
  %s6 = scalar_select 0, %s5, %s3
  $region1: #{_fq_per_tensor.1} parent=0
    #allocation2 [shape = 'u8[512]{0}', space=smem, size = 0x200, scoped, tag = 'input window, operand 0, single buffered']
    #allocation3 [shape = 's32[2]{0}', space=sflag, size = 0x8, scoped, tag = 'scoped memory for _fq_per_tensor.1']
    %7 = vsyncpa [#allocation3], 0
    loop: start=0, step=1, limit=4
    $region2: #{_fq_per_tensor.1} parent=1 // loop_pre_header
      _
    $region3: #{_fq_per_tensor.1} parent=1 // loop_header
      %s9 = sphi 0, %s13
      %p10 = scmp.ge.s32.totalorder %s9, 4
      %s17 = sphi 0, %s17
      %s19 = sphi 0, %s17
      %s20 = sphi 0, %s19
      %s34 = sphi 0, %s20
      %s40 = sphi 0, %s42
      %s43 = sphi 0, %s40
      %s44 = sphi 0, %s43
      %s60 = sphi 0, %s44
      %s66 = sphi 0, %s68
      %s69 = sphi 0, %s66
      %s70 = sphi 0, %s69
      %s86 = sphi 0, %s70
    $region4: #{_fq_per_tensor.1} parent=1 // loop_header_branch
      %12 = sbr.rel (%p10) target = $region8
    $region5: #{_fq_per_tensor.1} parent=1 // loop_body
      %s14 = ssub.s32 %s9, 1
      %s15 = ssub.s32 %s9, 2
      %s16 = sadd.s32 %s9, 1
      %s18 = sadd.s32 %s17, 1
      %p21 = scmp.eq.s32.totalorder %s9, 1
      %p22 = scmp.ne.s32.totalorder %s17, %s19
      %p23 = scmp.eq.s32.totalorder %s9, 0
      %p24 = por %p22, %p23
      %p25 = scmp.ne.s32.totalorder %s17, %s19
      %p26 = scmp.eq.s32.totalorder %s14, 1
      %p27 = por %p25, %p26
      %p28 = scmp.ne.s32.totalorder %s19, %s20
      %p29 = scmp.eq.s32.totalorder %s14, 0
      %p30 = por %p28, %p29
      %p31 = scmp.ne.s32.totalorder %s19, %s20
      %p32 = scmp.eq.s32.totalorder %s15, 1
      %p33 = por %p31, %p32
      %p35 = scmp.ne.s32.totalorder %s20, %s34
      %p36 = scmp.eq.s32.totalorder %s15, 0
      %p37 = por %p35, %p36
      %s38 = ssub.s32 %s9, %s16
      %p39 = scmp.eq.s32.totalorder %s38, 0
      %s41 = sadd.s32 %s40, 1
      %s42 = scalar_select %p39, %s40, %s41
      %p45 = pneg %p39
      %p46 = scmp.eq.s32.totalorder %s9, 1
      %p47 = por %p45, %p46
      %p48 = scmp.ne.s32.totalorder %s40, %s43
      %p49 = scmp.eq.s32.totalorder %s9, 0
      %p50 = por %p48, %p49
      %p51 = scmp.ne.s32.totalorder %s40, %s43
      %p52 = scmp.eq.s32.totalorder %s14, 1
      %p53 = por %p51, %p52
      %p54 = scmp.ne.s32.totalorder %s43, %s44
      %p55 = scmp.eq.s32.totalorder %s14, 0
      %p56 = por %p54, %p55
      %p57 = scmp.ne.s32.totalorder %s43, %s44
      %p58 = scmp.eq.s32.totalorder %s15, 1
      %p59 = por %p57, %p58
      %p61 = scmp.ne.s32.totalorder %s44, %s60
      %p62 = scmp.eq.s32.totalorder %s15, 0
      %p63 = por %p61, %p62
      %s64 = ssub.s32 %s9, %s16
      %p65 = scmp.eq.s32.totalorder %s64, 0
      %s67 = sadd.s32 %s66, 1
      %s68 = scalar_select %p65, %s66, %s67
      %p71 = pneg %p65
      %p72 = scmp.eq.s32.totalorder %s9, 1
      %p73 = por %p71, %p72
      %p74 = scmp.ne.s32.totalorder %s66, %s69
      %p75 = scmp.eq.s32.totalorder %s9, 0
      %p76 = por %p74, %p75
      %p77 = scmp.ne.s32.totalorder %s66, %s69
      %p78 = scmp.eq.s32.totalorder %s14, 1
      %p79 = por %p77, %p78
      %p80 = scmp.ne.s32.totalorder %s69, %s70
      %p81 = scmp.eq.s32.totalorder %s14, 0
      %p82 = por %p80, %p81
      %p83 = scmp.ne.s32.totalorder %s69, %s70
      %p84 = scmp.eq.s32.totalorder %s15, 1
      %p85 = por %p83, %p84
      %p87 = scmp.ne.s32.totalorder %s70, %s86
      %p88 = scmp.eq.s32.totalorder %s15, 0
      %p89 = por %p87, %p88
      %p90 = scmp.le.s32.totalorder 1, %s9
      %p91 = scmp.lt.s32.totalorder %s9, 3
      %p92 = pnand %p90, %p91
      %p93 = pneg %p92
      // Predicated region
      $region9: #{_fq_per_tensor.1} parent=5 // pred_check
        _
      $region10: #{_fq_per_tensor.1} parent=5 // pred_check_branch
        %95 = sbr.rel (%p92) target = $region12
      $region11: #{_fq_per_tensor.1} parent=5 // pred_region
        %s96 = ssub.s32 %s9, 1
        // Predicated region
        $region13: #{_fq_per_tensor.1} parent=11 // pred_check
          %p97 = pneg %p30
        $region14: #{_fq_per_tensor.1} parent=11 // pred_check_branch
          %99 = sbr.rel (%p97) target = $region16
        $region15: #{_fq_per_tensor.1} parent=11 // pred_region
          %s101 = ssub.s32 16, 16
          %102 = vsyncadd [#allocation3], %s101
          %s104 = sshll.u32 %s0, 4
          %s105 = int_to_ptr.vmem [resolvable:$true] %s104
          %107 = dma.vmem_to_smem %s105, 16, [#allocation2], [#allocation3]
        $region16: #{_fq_per_tensor.1} parent=11 // pred_fallthru
          _
      $region12: #{_fq_per_tensor.1} parent=5 // pred_fallthru
        _
      %p108 = scmp.lt.s32.totalorder %s9, 2
      // Predicated region
      $region17: #{_fq_per_tensor.1} parent=5 // pred_check
        %p109 = pneg %p108
      $region18: #{_fq_per_tensor.1} parent=5 // pred_check_branch
        %111 = sbr.rel (%p109) target = $region20
      $region19: #{_fq_per_tensor.1} parent=5 // pred_region
        // Predicated region
        $region21: #{_fq_per_tensor.1} parent=19 // pred_check
          %p112 = pneg %p50
        $region22: #{_fq_per_tensor.1} parent=19 // pred_check_branch
          %114 = sbr.rel (%p112) target = $region24
        $region23: #{_fq_per_tensor.1} parent=19 // pred_region
          %p115 = scmp.lt.s32.totalorder %s9, 1
          %s116 = scalar_select %p115, %s9, 1
          %s117 = smul.addr %s116, 8
          %s118 = smul.addr %s117, 8
          %s119 = scalar_lea.vmem %s1, %s118
        $region24: #{_fq_per_tensor.1} parent=19 // pred_fallthru
          _
      $region20: #{_fq_per_tensor.1} parent=5 // pred_fallthru
        _
      %p120 = scmp.le.s32.totalorder 1, %s9
      %p121 = scmp.lt.s32.totalorder %s9, 3
      %p122 = pnand %p120, %p121
      %p123 = pneg %p122
      // Predicated region
      $region25: #{_fq_per_tensor.1} parent=5 // pred_check
        _
      $region26: #{_fq_per_tensor.1} parent=5 // pred_check_branch
        %125 = sbr.rel (%p122) target = $region28
      $region27: #{_fq_per_tensor.1} parent=5 // pred_region
        %s126 = ssub.s32 %s9, 1
        // Predicated region
        $region29: #{_fq_per_tensor.1} parent=27 // pred_check
          %p127 = pneg %p30
        $region30: #{_fq_per_tensor.1} parent=27 // pred_check_branch
          %129 = sbr.rel (%p127) target = $region32
        $region31: #{_fq_per_tensor.1} parent=27 // pred_region
          %130 = dma.done [#allocation3], 16
        $region32: #{_fq_per_tensor.1} parent=27 // pred_fallthru
          _
        %131 = sfence
        %p132 = pneg %p30
        %p133 = pneg %p27
        %p134 = scmp.lt.s32.totalorder %s14, 1
        %s135 = scalar_select %p134, %s14, 1
        %s136 = smul.addr %s135, 8
        %s137 = smul.addr %s136, 8
        %s138 = scalar_lea.vmem %s1, %s137
        %p139 = pneg %p56
        %p140 = pneg %p53
        %p141 = pneg %p82
        %p142 = pneg %p79
        %p143 = scmp.lt.s32.totalorder %s14, 1
        %s144 = scalar_select %p143, %s14, 1
        %s145 = smul.addr %s144, 8
        %s146 = smul.addr %s145, 8
        %s147 = scalar_lea.vmem %s2, %s146
        %p148 = scmp.lt.s32.totalorder %s14, 1
        %s149 = scalar_select %p148, %s14, 1
        %s150 = smul.addr %s149, 8
        %s151 = smul.addr %s150, 8
        %s152 = scalar_lea.vmem %s1, %s151
        %p153 = scmp.lt.s32.totalorder %s14, 1
        %s154 = scalar_select %p153, %s14, 1
        %s155 = smul.addr %s154, 8
        %s156 = smul.addr %s155, 8
        %s157 = scalar_lea.vmem %s2, %s156
        %s158 = sld [smem:[#allocation2]]
        %s159 = sld [smem:[#allocation2 + $0x1]]
        %s160 = sld [smem:[#allocation2 + $0x2]]
        %v161 = vld [vmem:[%s152] sm:$0xff]
        %v162 = vld [vmem:[%s152 + $0x8] sm:$0xff]
        %v163 = vld [vmem:[%s152 + $0x10] sm:$0xff]
        %v164 = vld [vmem:[%s152 + $0x18] sm:$0xff]
        %v165 = vld [vmem:[%s152 + $0x20] sm:$0xff]
        %v166 = vld [vmem:[%s152 + $0x28] sm:$0xff]
        %v167 = vld [vmem:[%s152 + $0x30] sm:$0xff]
        %v168 = vld [vmem:[%s152 + $0x38] sm:$0xff]
        %v169 = vstv %s158
        %v170 = vmul.f32 %v161, %v169
        %v171 = vmul.f32 %v162, %v169
        %v172 = vmul.f32 %v163, %v169
        %v173 = vmul.f32 %v164, %v169
        %v174 = vmul.f32 %v165, %v169
        %v175 = vmul.f32 %v166, %v169
        %v176 = vmul.f32 %v167, %v169
        %v177 = vmul.f32 %v168, %v169
        %v178 = vround.ne.pseudo %v170
        %v179 = vround.ne.pseudo %v171
        %v180 = vround.ne.pseudo %v172
        %v181 = vround.ne.pseudo %v173
        %v182 = vround.ne.pseudo %v174
        %v183 = vround.ne.pseudo %v175
        %v184 = vround.ne.pseudo %v176
        %v185 = vround.ne.pseudo %v177
        %v186 = vstv %s160
        %v187 = vadd.f32 %v178, %v186
        %v188 = vadd.f32 %v179, %v186
        %v189 = vadd.f32 %v180, %v186
        %v190 = vadd.f32 %v181, %v186
        %v191 = vadd.f32 %v182, %v186
        %v192 = vadd.f32 %v183, %v186
        %v193 = vadd.f32 %v184, %v186
        %v194 = vadd.f32 %v185, %v186
        %v195 = vmax.f32 %v187, 0.0
        %v196 = vmax.f32 %v188, 0.0
        %v197 = vmax.f32 %v189, 0.0
        %v198 = vmax.f32 %v190, 0.0
        %v199 = vmax.f32 %v191, 0.0
        %v200 = vmax.f32 %v192, 0.0
        %v201 = vmax.f32 %v193, 0.0
        %v202 = vmax.f32 %v194, 0.0
        %v203 = vmin.f32 %v195, 255.0
        %v204 = vmin.f32 %v196, 255.0
        %v205 = vmin.f32 %v197, 255.0
        %v206 = vmin.f32 %v198, 255.0
        %v207 = vmin.f32 %v199, 255.0
        %v208 = vmin.f32 %v200, 255.0
        %v209 = vmin.f32 %v201, 255.0
        %v210 = vmin.f32 %v202, 255.0
        %v211 = vsub.f32 %v203, %v186
        %v212 = vsub.f32 %v204, %v186
        %v213 = vsub.f32 %v205, %v186
        %v214 = vsub.f32 %v206, %v186
        %v215 = vsub.f32 %v207, %v186
        %v216 = vsub.f32 %v208, %v186
        %v217 = vsub.f32 %v209, %v186
        %v218 = vsub.f32 %v210, %v186
        %v219 = vstv %s159
        %v220 = vmul.f32 %v211, %v219
        %v221 = vmul.f32 %v212, %v219
        %v222 = vmul.f32 %v213, %v219
        %v223 = vmul.f32 %v214, %v219
        %v224 = vmul.f32 %v215, %v219
        %v225 = vmul.f32 %v216, %v219
        %v226 = vmul.f32 %v217, %v219
        %v227 = vmul.f32 %v218, %v219
        %228 = vst [vmem:[%s157] sm:$0xff] %v220
        %229 = vst [vmem:[%s157 + $0x8] sm:$0xff] %v221
        %230 = vst [vmem:[%s157 + $0x10] sm:$0xff] %v222
        %231 = vst [vmem:[%s157 + $0x18] sm:$0xff] %v223
        %232 = vst [vmem:[%s157 + $0x20] sm:$0xff] %v224
        %233 = vst [vmem:[%s157 + $0x28] sm:$0xff] %v225
        %234 = vst [vmem:[%s157 + $0x30] sm:$0xff] %v226
        %235 = vst [vmem:[%s157 + $0x38] sm:$0xff] %v227
        %p236 = scmp.lt.s32.totalorder %s14, 1
        %s237 = scalar_select %p236, %s14, 1
        %s238 = smul.addr %s237, 8
        %s239 = smul.addr %s238, 8
        %s240 = scalar_lea.vmem %s2, %s239
        // Predicated region
        $region33: #{_fq_per_tensor.1} parent=27 // pred_check
          %p241 = pneg %p79
        $region34: #{_fq_per_tensor.1} parent=27 // pred_check_branch
          %243 = sbr.rel (%p241) target = $region36
        $region35: #{_fq_per_tensor.1} parent=27 // pred_region
          _
        $region36: #{_fq_per_tensor.1} parent=27 // pred_fallthru
          _
      $region28: #{_fq_per_tensor.1} parent=5 // pred_fallthru
        _
      %p244 = scmp.le.s32.totalorder 2, %s9
      // Predicated region
      $region37: #{_fq_per_tensor.1} parent=5 // pred_check
        %p245 = pneg %p244
      $region38: #{_fq_per_tensor.1} parent=5 // pred_check_branch
        %247 = sbr.rel (%p245) target = $region40
      $region39: #{_fq_per_tensor.1} parent=5 // pred_region
        %s248 = ssub.s32 %s9, 2
        // Predicated region
        $region41: #{_fq_per_tensor.1} parent=39 // pred_check
          %p249 = pneg %p85
        $region42: #{_fq_per_tensor.1} parent=39 // pred_check_branch
          %251 = sbr.rel (%p249) target = $region44
        $region43: #{_fq_per_tensor.1} parent=39 // pred_region
          %p252 = scmp.lt.s32.totalorder %s15, 1
          %s253 = scalar_select %p252, %s15, 1
          %s254 = smul.addr %s253, 8
          %s255 = smul.addr %s254, 8
          %s256 = scalar_lea.vmem %s2, %s255
        $region44: #{_fq_per_tensor.1} parent=39 // pred_fallthru
          _
      $region40: #{_fq_per_tensor.1} parent=5 // pred_fallthru
        _
    $region6: #{_fq_per_tensor.1} parent=1 // loop_footer
      %s13 = sadd.s32 1, %s9
    $region7: #{_fq_per_tensor.1} parent=1 // loop_footer_branch
      %8 = sbr.rel target = $region3
    $region8: #{_fq_per_tensor.1} parent=1 // loop_exit
      _
    %257 = vsyncpa [#allocation3], 1
    %s258 = scalar_lea.sflag [#allocation3], 1
    %259 = vsyncpa %s258, 1

</llo_original>
